<compile_context>
chip_gen: v7x
topology: tpu7x:2x2x1
jax: 0.10.0
libtpu: 0.0.40
codegen_flags: <defaults>
</compile_context>

<pallas_src>
import math

import jax
import jax.numpy as jnp
from jax.experimental import pallas as pl
from jax.experimental.pallas import tpu as pltpu

# Keep scoped VMEM within v7x's 32 MiB default (64 MiB physical); plenty for these tiles.
VMEM_LIMIT_BYTES = 32 * 1024 * 1024


def _round_up(x, m):
    return (x + m - 1) // m * m


def _pick_tk(fp):
    # fp is a multiple of 128, so this always returns.
    for tk in (512, 256, 128):
        if fp % tk == 0:
            return tk
    return fp


# ----------------------------- Kernel 1: backbone (Linear + ReLU) -----------------------------
def backbone_kernel(x_ref, w_ref, b_ref, feats_ref, acc_ref):
    """feats = relu(X @ W + b); reduction over the k (input-feature) grid axis."""
    k = pl.program_id(1)

    @pl.when(k == 0)
    def _():
        acc_ref[...] = jnp.zeros_like(acc_ref)

    # bf16 x bf16 -> f32 accumulation on the MXU.
    acc_ref[...] += jnp.dot(x_ref[...], w_ref[...],
                            preferred_element_type=jnp.float32)

    @pl.when(k == pl.num_programs(1) - 1)
    def _():
        # Bias + ReLU hoisted into the finalize phase (once per row tile, not per k-step).
        feats = jnp.maximum(acc_ref[...] + b_ref[...], 0.0)
        feats_ref[...] = feats.astype(feats_ref.dtype)


def compute_features(x_p, w_p, b_p, *, tm, tk):
    np_, fp = x_p.shape
    dp = w_p.shape[1]
    return pl.pallas_call(
        backbone_kernel,
        out_shape=jax.ShapeDtypeStruct((np_, dp), jnp.bfloat16),
        grid_spec=pltpu.PrefetchScalarGridSpec(
            num_scalar_prefetch=0,
            grid=(np_ // tm, fp // tk),
            in_specs=[
                pl.BlockSpec((tm, tk), lambda i, k: (i, k)),   # X row/k tile
                pl.BlockSpec((tk, dp), lambda i, k: (k, 0)),   # W k tile (full D)
                pl.BlockSpec((1, dp), lambda i, k: (0, 0)),    # bias (full)
            ],
            out_specs=pl.BlockSpec((tm, dp), lambda i, k: (i, 0)),
            scratch_shapes=[pltpu.VMEM((tm, dp), jnp.float32)],
        ),
        compiler_params=pltpu.CompilerParams(
            dimension_semantics=("parallel", "arbitrary"),
            vmem_limit_bytes=VMEM_LIMIT_BYTES),
        cost_estimate=pl.CostEstimate(
            flops=2 * np_ * fp * dp,
            transcendentals=0,
            bytes_accessed=np_ * fp * 2 + fp * dp * 2 + np_ * dp * 2),
    )(x_p, w_p, b_p)


# ----------------------------- Kernel 2: squared euclidean distance ---------------------------
def eudist_kernel(fi_ref, fj_ref, out_ref):
    """out[i, j] = ||f_i||^2 + ||f_j||^2 - 2 * f_i . f_j  (squared distance, no sqrt/clamp)."""
    fi = fi_ref[...]                                   # (tm, Dp) bf16
    fj = fj_ref[...]                                   # (tn, Dp) bf16

    # Gram tile on the MXU; contract the feature axis of both operands (q·k^T pattern).
    gram = jax.lax.dot_general(fi, fj, (((1,), (1,)), ((), ())),
                               preferred_element_type=jnp.float32)      # (tm, tn)

    fif = fi.astype(jnp.float32)
    fjf = fj.astype(jnp.float32)

    # ||f_i||^2 as a column via a lane reduction.
    xx = jnp.sum(fif * fif, axis=1, keepdims=True)                      # (tm, 1)

    # ||f_j||^2 as a row via a skinny matmul (avoids an in-kernel transpose).
    ones_row = jnp.ones((1, fjf.shape[1]), jnp.float32)
    yy = jax.lax.dot_general(ones_row, fjf * fjf, (((1,), (1,)), ((), ())),
                             preferred_element_type=jnp.float32)        # (1, tn)

    out_ref[...] = xx + yy - 2.0 * gram


def compute_eudist(feats, *, tm, tn):
    np_, dp = feats.shape
    return pl.pallas_call(
        eudist_kernel,
        out_shape=jax.ShapeDtypeStruct((np_, np_), jnp.float32),
        grid_spec=pltpu.PrefetchScalarGridSpec(
            num_scalar_prefetch=0,
            grid=(np_ // tm, np_ // tn),
            in_specs=[
                pl.BlockSpec((tm, dp), lambda i, j: (i, 0)),   # query rows
                pl.BlockSpec((tn, dp), lambda i, j: (j, 0)),   # key rows
            ],
            out_specs=pl.BlockSpec((tm, tn), lambda i, j: (i, j)),
        ),
        compiler_params=pltpu.CompilerParams(
            dimension_semantics=("parallel", "parallel"),
            vmem_limit_bytes=VMEM_LIMIT_BYTES),
        cost_estimate=pl.CostEstimate(
            flops=2 * np_ * np_ * dp + 4 * np_ * np_,
            transcendentals=0,
            bytes_accessed=2 * np_ * dp * 2 + np_ * np_ * 4),
    )(feats, feats)


# ---------------------------------------- forward / loss --------------------------------------
def cpn_cr_loss(x, w, b, aug_num, temp=5.0):
    """Mirrors CPN_CR.forward (returns the scalar loss)."""
    batch = x.shape[0]
    A, B = aug_num, batch
    C, H, W = x.shape[-3:]
    D = w.shape[1]
    N = A * B
    F = C * H * W

    # Batch-major flatten: a free reshape (no HBM round trip for the aug-major transpose of the
    # big input). Row m = b*A + a holds x[b, a].flatten() (NCHW row-major), same contents as the
    # reference, just permuted rows; the permutation is undone on the tiny (N, N) matrix below.
    x_flat = x.reshape(N, F).astype(jnp.bfloat16)
    w_bf = w.astype(jnp.bfloat16)

    # Pad to MXU / lane-friendly multiples of 128 (lane-dense outputs, aligned tiles).
    Np = _round_up(N, 128)
    Fp = _round_up(F, 128)
    Dp = _round_up(D, 128)
    tm = tn = 128
    tk = _pick_tk(Fp)

    x_p = jnp.pad(x_flat, ((0, Np - N), (0, Fp - F)))
    w_p = jnp.pad(w_bf, ((0, Fp - F), (0, Dp - D)))
    b_p = jnp.pad(b.astype(jnp.float32).reshape(1, D), ((0, 0), (0, Dp - D)))

    feats = compute_features(x_p, w_p, b_p, tm=tm, tk=tk)   # (Np, Dp) bf16
    eudis_p = compute_eudist(feats, tm=tm, tn=tn)           # (Np, Np) f32

    # Slice real rows and permute batch-major -> aug-major (n = a*B + b  <->  m = b*A + a),
    # which matches the reference's x.transpose(0, 1).reshape(-1, ...) row order exactly.
    idx = jnp.arange(N)
    perm = (idx % B) * A + idx // B
    eudis = eudis_p[:N, :N][perm][:, perm]

    logits = -eudis.reshape(A * B * A, B)

    # targets = repeat(range(batch), aug_num) tiled aug_num times (matches torch).
    targets = jnp.tile(jnp.repeat(jnp.arange(B), A), A)     # (A*B*A,)

    # nn.CrossEntropyLoss (mean reduction) on logits / temp.
    scaled = logits / temp
    log_z = jax.nn.logsumexp(scaled, axis=1)
    picked = jnp.take_along_axis(scaled, targets[:, None], axis=1)[:, 0]
    ce_loss = jnp.mean(log_z - picked)

    # Symmetric-KL consistency loss.
    probs = jax.nn.softmax(logits / jnp.sqrt(jnp.float32(D)), axis=1)
    probs = probs.reshape(A, B, A, B).transpose(0, 2, 1, 3)   # (A, A, B, B)
    p = probs[None, :, :, :, :]      # probs_p[i, j] = probs[j]
    q = probs[:, None, :, :, :]      # probs_q[i, j] = probs[i]
    eps = 1e-12
    cr = (p * (jnp.log(p + eps) - jnp.log(q + eps))
          + q * (jnp.log(q + eps) - jnp.log(p + eps)))
    cr_loss = jnp.mean(jnp.sum(cr, axis=-1))

    return ce_loss + cr_loss


if __name__ == "__main__":
    batch, aug_num = 2, 4
    C, H, W = 4, 8, 8
    D = 32
    F = C * H * W

    key = jax.random.PRNGKey(0)
    kx, kw, kb = jax.random.split(key, 3)

    # Deterministic synthetic inputs / backbone parameters.
    x = jax.random.normal(kx, (batch, aug_num, C, H, W), dtype=jnp.float32)
    w = jax.random.normal(kw, (F, D), dtype=jnp.float32) * (1.0 / math.sqrt(F))
    b = jax.random.normal(kb, (1, D), dtype=jnp.float32) * 0.01

    loss_fn = jax.jit(cpn_cr_loss, static_argnames=("aug_num", "temp"))
    loss = loss_fn(x, w, b, aug_num=aug_num)
    jax.block_until_ready(loss)

    assert loss.shape == () and bool(jnp.isfinite(loss))
    print("KERNEL_OK")
</pallas_src>

<mosaic_0001>
module attributes {stable_mosaic.version = 11 : i64} {
  func.func @eudist_kernel(%arg0: i32, %arg1: i32, %arg2: memref<128x128xbf16, #tpu.memory_space<vmem>>, %arg3: memref<128x128xbf16, #tpu.memory_space<vmem>>, %arg4: memref<128x128xf32, #tpu.memory_space<vmem>>) attributes {dimension_semantics = [#tpu.dimension_semantics<parallel>, #tpu.dimension_semantics<parallel>], iteration_bounds = array<i64: 1, 1>, scalar_prefetch = 0 : i64, scratch_operands = 0 : i64, tpu.core_type = #tpu.core_type<tc>, window_params = [{transform_indices = @transform_0, window_bounds = array<i64: 128, 128>}, {transform_indices = @transform_1, window_bounds = array<i64: 128, 128>}, {transform_indices = @transform_2, window_bounds = array<i64: 128, 128>}]} {
    %c0 = arith.constant 0 : index
    %c0_0 = arith.constant 0 : index
    %0 = vector.load %arg2[%c0, %c0_0] : memref<128x128xbf16, #tpu.memory_space<vmem>>, vector<128x128xbf16>
    %c0_1 = arith.constant 0 : index
    %c0_2 = arith.constant 0 : index
    %1 = vector.load %arg3[%c0_1, %c0_2] : memref<128x128xbf16, #tpu.memory_space<vmem>>, vector<128x128xbf16>
    %cst = arith.constant dense<0.000000e+00> : vector<128x128xf32>
    %2 = tpu.matmul %0, %1, %cst {dimension_numbers = #tpu.dot_dimension_numbers<[1], [1], [0], [0], [0, 0, 1, 0], [], []>} : vector<128x128xbf16>, vector<128x128xbf16>, vector<128x128xf32> -> vector<128x128xf32>
    %3 = arith.extf %0 : vector<128x128xbf16> to vector<128x128xf32>
    %4 = arith.extf %1 : vector<128x128xbf16> to vector<128x128xf32>
    %5 = arith.mulf %3, %3 : vector<128x128xf32>
    %cst_3 = arith.constant dense<0.000000e+00> : vector<128xf32>
    %6 = vector.multi_reduction <add>, %5, %cst_3 [1] : vector<128x128xf32> to vector<128xf32>
    %7 = vector.shape_cast %6 : vector<128xf32> to vector<128x1xf32>
    %cst_4 = arith.constant 1.000000e+00 : f32
    %8 = vector.broadcast %cst_4 : f32 to vector<1x128xf32>
    %9 = arith.mulf %4, %4 : vector<128x128xf32>
    %cst_5 = arith.constant dense<0.000000e+00> : vector<1x128xf32>
    %10 = tpu.matmul %8, %9, %cst_5 {dimension_numbers = #tpu.dot_dimension_numbers<[1], [1], [0], [0], [0, 0, 1, 0], [], []>} : vector<1x128xf32>, vector<128x128xf32>, vector<1x128xf32> -> vector<1x128xf32>
    %11 = vector.broadcast %7 : vector<128x1xf32> to vector<128x128xf32>
    %12 = vector.broadcast %10 : vector<1x128xf32> to vector<128x128xf32>
    %13 = arith.addf %11, %12 : vector<128x128xf32>
    %cst_6 = arith.constant 2.000000e+00 : f32
    %14 = vector.broadcast %cst_6 : f32 to vector<128x128xf32>
    %15 = arith.mulf %14, %2 : vector<128x128xf32>
    %16 = arith.subf %13, %15 : vector<128x128xf32>
    %c0_7 = arith.constant 0 : index
    %c0_8 = arith.constant 0 : index
    %17 = vector.load %arg4[%c0_7, %c0_8] : memref<128x128xf32, #tpu.memory_space<vmem>>, vector<128x128xf32>
    tpu.vector_store %arg4[%c0_7, %c0_8], %16 {strides = array<i32>} : memref<128x128xf32, #tpu.memory_space<vmem>>, vector<128x128xf32>,
    return
  }
  func.func @transform_0(%arg0: i32, %arg1: i32) -> (i32, i32) {
    %c0_i32 = arith.constant 0 : i32
    %c0_i32_0 = arith.constant 0 : i32
    return %arg0, %c0_i32 : i32, i32
  }
  func.func @transform_1(%arg0: i32, %arg1: i32) -> (i32, i32) {
    %c0_i32 = arith.constant 0 : i32
    %c0_i32_0 = arith.constant 0 : i32
    return %arg1, %c0_i32 : i32, i32
  }
  func.func @transform_2(%arg0: i32, %arg1: i32) -> (i32, i32) {
    %c0_i32 = arith.constant 0 : i32
    return %arg0, %arg1 : i32, i32
  }
}

module attributes {stable_mosaic.version = 11 : i64} {
  func.func @backbone_kernel(%arg0: i32, %arg1: i32, %arg2: memref<128x256xbf16, #tpu.memory_space<vmem>>, %arg3: memref<256x128xbf16, #tpu.memory_space<vmem>>, %arg4: memref<1x128xf32, #tpu.memory_space<vmem>>, %arg5: memref<128x128xbf16, #tpu.memory_space<vmem>>, %arg6: memref<128x128xf32, #tpu.memory_space<vmem>>) attributes {dimension_semantics = [#tpu.dimension_semantics<parallel>, #tpu.dimension_semantics<arbitrary>], iteration_bounds = array<i64: 1, 1>, scalar_prefetch = 0 : i64, scratch_operands = 1 : i64, tpu.core_type = #tpu.core_type<tc>, window_params = [{transform_indices = @transform_0, window_bounds = array<i64: 128, 256>}, {transform_indices = @transform_1, window_bounds = array<i64: 256, 128>}, {pipeline_mode = #tpu.pipeline_mode<synchronous>, transform_indices = @transform_2, window_bounds = array<i64: 1, 128>}, {transform_indices = @transform_3, window_bounds = array<i64: 128, 128>}]} {
    %c0_i32 = arith.constant 0 : i32
    %0 = arith.cmpi eq, %arg1, %c0_i32 : i32
    %1 = arith.extui %0 : i1 to i32
    %c0_i32_0 = arith.constant 0 : i32
    %2 = arith.cmpi ne, %1, %c0_i32_0 : i32
    scf.if %2 {
      %cst_10 = arith.constant 0.000000e+00 : f32
      %12 = vector.broadcast %cst_10 : f32 to vector<128x128xf32>
      %c0_11 = arith.constant 0 : index
      %c0_12 = arith.constant 0 : index
      %13 = vector.load %arg6[%c0_11, %c0_12] : memref<128x128xf32, #tpu.memory_space<vmem>>, vector<128x128xf32>
      tpu.vector_store %arg6[%c0_11, %c0_12], %12 {strides = array<i32>} : memref<128x128xf32, #tpu.memory_space<vmem>>, vector<128x128xf32>,
    } else {
    }
    %c0 = arith.constant 0 : index
    %c0_1 = arith.constant 0 : index
    %3 = vector.load %arg6[%c0, %c0_1] : memref<128x128xf32, #tpu.memory_space<vmem>>, vector<128x128xf32>
    %c0_2 = arith.constant 0 : index
    %c0_3 = arith.constant 0 : index
    %4 = vector.load %arg2[%c0_2, %c0_3] : memref<128x256xbf16, #tpu.memory_space<vmem>>, vector<128x256xbf16>
    %c0_4 = arith.constant 0 : index
    %c0_5 = arith.constant 0 : index
    %5 = vector.load %arg3[%c0_4, %c0_5] : memref<256x128xbf16, #tpu.memory_space<vmem>>, vector<256x128xbf16>
    %cst = arith.constant dense<0.000000e+00> : vector<128x128xf32>
    %6 = tpu.matmul %4, %5, %cst {dimension_numbers = #tpu.dot_dimension_numbers<[1], [0], [0], [1], [0, 0, 1, 1], [], []>} : vector<128x256xbf16>, vector<256x128xbf16>, vector<128x128xf32> -> vector<128x128xf32>
    %7 = arith.addf %3, %6 : vector<128x128xf32>
    %c0_6 = arith.constant 0 : index
    %c0_7 = arith.constant 0 : index
    %8 = vector.load %arg6[%c0_6, %c0_7] : memref<128x128xf32, #tpu.memory_space<vmem>>, vector<128x128xf32>
    tpu.vector_store %arg6[%c0_6, %c0_7], %7 {strides = array<i32>} : memref<128x128xf32, #tpu.memory_space<vmem>>, vector<128x128xf32>,
    %c0_i32_8 = arith.constant 0 : i32
    %9 = arith.cmpi eq, %arg1, %c0_i32_8 : i32
    %10 = arith.extui %9 : i1 to i32
    %c0_i32_9 = arith.constant 0 : i32
    %11 = arith.cmpi ne, %10, %c0_i32_9 : i32
    scf.if %11 {
      %c0_10 = arith.constant 0 : index
      %c0_11 = arith.constant 0 : index
      %12 = vector.load %arg6[%c0_10, %c0_11] : memref<128x128xf32, #tpu.memory_space<vmem>>, vector<128x128xf32>
      %c0_12 = arith.constant 0 : index
      %c0_13 = arith.constant 0 : index
      %13 = vector.load %arg4[%c0_12, %c0_13] : memref<1x128xf32, #tpu.memory_space<vmem>>, vector<1x128xf32>
      %14 = vector.broadcast %13 : vector<1x128xf32> to vector<128x128xf32>
      %15 = arith.addf %12, %14 : vector<128x128xf32>
      %cst_14 = arith.constant 0.000000e+00 : f32
      %16 = vector.broadcast %cst_14 : f32 to vector<128x128xf32>
      %17 = arith.maximumf %15, %16 : vector<128x128xf32>
      %18 = arith.truncf %17 : vector<128x128xf32> to vector<128x128xbf16>
      %c0_15 = arith.constant 0 : index
      %c0_16 = arith.constant 0 : index
      %19 = vector.load %arg5[%c0_15, %c0_16] : memref<128x128xbf16, #tpu.memory_space<vmem>>, vector<128x128xbf16>
      tpu.vector_store %arg5[%c0_15, %c0_16], %18 {strides = array<i32>} : memref<128x128xbf16, #tpu.memory_space<vmem>>, vector<128x128xbf16>,
    } else {
    }
    return
  }
  func.func @transform_0(%arg0: i32, %arg1: i32) -> (i32, i32) {
    %c0_i32 = arith.constant 0 : i32
    return %arg0, %arg1 : i32, i32
  }
  func.func @transform_1(%arg0: i32, %arg1: i32) -> (i32, i32) {
    %c0_i32 = arith.constant 0 : i32
    %c0_i32_0 = arith.constant 0 : i32
    return %arg1, %c0_i32 : i32, i32
  }
  func.func @transform_2(%arg0: i32, %arg1: i32) -> (i32, i32) {
    %c0_i32 = arith.constant 0 : i32
    %c0_i32_0 = arith.constant 0 : i32
    %c0_i32_1 = arith.constant 0 : i32
    return %c0_i32, %c0_i32_0 : i32, i32
  }
  func.func @transform_3(%arg0: i32, %arg1: i32) -> (i32, i32) {
    %c0_i32 = arith.constant 0 : i32
    %c0_i32_0 = arith.constant 0 : i32
    return %arg0, %c0_i32 : i32, i32
  }
}

</mosaic_0001>

<llo_original>
// kernel: tile.5
$region0: #{tile.5}
  %s0 = inlined_call_operand.vmem [shape: s32[2,4], index: 0, kind: input, shape index: {}]
  %s1 = inlined_call_operand.vmem [shape: s32[8], index: 1, kind: output, shape index: {}]
  $region1: #{tile.5} parent=0
    #allocation0 [shape = 'u8[4096]{0}', space=vmem, size = 0x1000, scoped, tag = 'scoped mem for output reshape']
    #allocation1 [shape = 'u8[4096]{0}', space=vmem, size = 0x1000, scoped, tag = 'scoped mem for input reshape']
    %s3 = sshllo.u32 0, 2
    %v4 = vld [vmem:[%s0] sm:%s3]
    %5 = vst [vmem:[#allocation1] sm:%s3] %v4
    %v6 = vld [vmem:[#allocation1] sm:$0x1]
    %vm7 = vcmask 31744
    %8 = vst.msk [vmem:[#allocation0] sm:$0x1] %vm7, %v6
    %s9 = scalar_lea.vmem [#allocation1], 1
    %v10 = vld [vmem:[%s9] sm:$0x1]
    %11 = vrot.lane.b32.xlu0 %v10, 4
    %v12 = vpop.permute.xlu0 %11
    %vm13 = vcmask 64544
    %14 = vst.msk [vmem:[#allocation0] sm:$0x1] %vm13, %v12
    %s16 = sshllo.u32 0, 1
    %v18 = vld [vmem:[#allocation0] sm:%s16]
    %s19 = sshllo.u32 0, 1
    %20 = vst [vmem:[%s1] sm:%s19] %v18

// kernel: tile.6
$region0: #{tile.6}
  #allocation0 [shape = 's32[1]{0}', space=sflag, size = 0x4, scoped, tag = 'scoped memory for tile.6']
  %s0 = inlined_call_operand.vmem [shape: s32[8], index: 0, kind: input, shape index: {}]
  %s1 = inlined_call_operand.vmem [shape: s32[4,8], index: 1, kind: output, shape index: {}]
  // Predicated region
  $region2: #{tile.6} parent=0 // pred_check
    _
  $region3: #{tile.6} parent=0 // pred_check_branch
    %3 = sbr.rel (0) target = $region5
  $region4: #{tile.6} parent=0 // pred_region
    _
  $region5: #{tile.6} parent=0 // pred_fallthru
    _
  %v4 = vld [vmem:[%s0] ss:$0 sm:$0xff]
  %5 = vst [vmem:[%s1] sm:$0xf] %v4

// kernel: cpn_cr_loss.3
$region0: #{cpn_cr_loss.3}
  #allocation0 [shape = 'u32[]', space=smem, size = 0x4, offset = 0x4, fixed_abs, tag = 'smem constant byte address 0x4 - core index']
  #allocation1 [shape = 'u32[144,128]{1,0:T(1,128)}', space=vmem, size = 0x12000, scoped, tag = 'internal scratch']
  %s0 = inlined_call_operand.vmem [shape: bf16[128,128], index: 0, kind: input, shape index: {}, may-alias: {0,1}]
  %s1 = inlined_call_operand.vmem [shape: bf16[128,128], index: 1, kind: input, shape index: {}, may-alias: {0,1}]
  %s2 = inlined_call_operand.vmem [shape: f32[128,128], index: 2, kind: output, shape index: {}]
  %s3 = sld [smem:[#allocation0]]
  $region18: #{cpn_cr_loss.3} parent=0
    _
  %s5 = ssub.s32 1, %s3
  %s6 = scalar_select 0, %s5, %s3
  // Predicated region
  $region2: #{cpn_cr_loss.3} parent=0 // pred_check
    _
  $region3: #{cpn_cr_loss.3} parent=0 // pred_check_branch
    %8 = sbr.rel (0) target = $region5
  $region4: #{cpn_cr_loss.3} parent=0 // pred_region
    _
  $region5: #{cpn_cr_loss.3} parent=0 // pred_fallthru
    _
  // Predicated region
  $region6: #{cpn_cr_loss.3} parent=0 // pred_check
    _
  $region7: #{cpn_cr_loss.3} parent=0 // pred_check_branch
    %10 = sbr.rel (0) target = $region9
  $region8: #{cpn_cr_loss.3} parent=0 // pred_region
    _
  $region9: #{cpn_cr_loss.3} parent=0 // pred_fallthru
    _
  %v12 = vld [vmem:[%s0] sm:$0xf]
  %v13 = vld [vmem:[%s0 + $0x4] sm:$0xf]
  %v14 = vld [vmem:[%s0 + $0x8] sm:$0xf]
  %v15 = vld [vmem:[%s0 + $0xc] sm:$0xf]
  %v16 = vld [vmem:[%s0 + $0x10] sm:$0xf]
  %v17 = vld [vmem:[%s0 + $0x14] sm:$0xf]
  %v18 = vld [vmem:[%s0 + $0x18] sm:$0xf]
  %v19 = vld [vmem:[%s0 + $0x1c] sm:$0xf]
  %v20 = vld [vmem:[%s0 + $0x20] sm:$0xf]
  %v21 = vld [vmem:[%s0 + $0x24] sm:$0xf]
  %v22 = vld [vmem:[%s0 + $0x28] sm:$0xf]
  %v23 = vld [vmem:[%s0 + $0x2c] sm:$0xf]
  %v24 = vld [vmem:[%s0 + $0x30] sm:$0xf]
  %v25 = vld [vmem:[%s0 + $0x34] sm:$0xf]
  %v26 = vld [vmem:[%s0 + $0x38] sm:$0xf]
  %v27 = vld [vmem:[%s0 + $0x3c] sm:$0xf]
  %v28 = vld [vmem:[%s1] sm:$0xf]
  %v29 = vld [vmem:[%s1 + $0x4] sm:$0xf]
  %v30 = vld [vmem:[%s1 + $0x8] sm:$0xf]
  %v31 = vld [vmem:[%s1 + $0xc] sm:$0xf]
  %v32 = vld [vmem:[%s1 + $0x10] sm:$0xf]
  %v33 = vld [vmem:[%s1 + $0x14] sm:$0xf]
  %v34 = vld [vmem:[%s1 + $0x18] sm:$0xf]
  %v35 = vld [vmem:[%s1 + $0x1c] sm:$0xf]
  %v36 = vld [vmem:[%s1 + $0x20] sm:$0xf]
  %v37 = vld [vmem:[%s1 + $0x24] sm:$0xf]
  %v38 = vld [vmem:[%s1 + $0x28] sm:$0xf]
  %v39 = vld [vmem:[%s1 + $0x2c] sm:$0xf]
  %v40 = vld [vmem:[%s1 + $0x30] sm:$0xf]
  %v41 = vld [vmem:[%s1 + $0x34] sm:$0xf]
  %v42 = vld [vmem:[%s1 + $0x38] sm:$0xf]
  %v43 = vld [vmem:[%s1 + $0x3c] sm:$0xf]
  %v60 = vunpack.c.l.b16 %v12
  %v61 = vunpack.c.l.b16 %v13
  %v62 = vunpack.c.l.b16 %v14
  %v63 = vunpack.c.l.b16 %v15
  %v64 = vunpack.c.l.b16 %v16
  %v65 = vunpack.c.l.b16 %v17
  %v66 = vunpack.c.l.b16 %v18
  %v67 = vunpack.c.l.b16 %v19
  %v68 = vunpack.c.l.b16 %v20
  %v69 = vunpack.c.l.b16 %v21
  %v70 = vunpack.c.l.b16 %v22
  %v71 = vunpack.c.l.b16 %v23
  %v72 = vunpack.c.l.b16 %v24
  %v73 = vunpack.c.l.b16 %v25
  %v74 = vunpack.c.l.b16 %v26
  %v75 = vunpack.c.l.b16 %v27
  %v76 = vpack.c.b16 %v61, %v60
  %v77 = vpack.c.b16 %v63, %v62
  %v78 = vpack.c.b16 %v65, %v64
  %v79 = vpack.c.b16 %v67, %v66
  %v80 = vpack.c.b16 %v69, %v68
  %v81 = vpack.c.b16 %v71, %v70
  %v82 = vpack.c.b16 %v73, %v72
  %v83 = vpack.c.b16 %v75, %v74
  %v108 = vunpack.c.l.b16 %v28
  %v109 = vunpack.c.l.b16 %v29
  %v110 = vunpack.c.l.b16 %v30
  %v111 = vunpack.c.l.b16 %v31
  %v112 = vunpack.c.l.b16 %v32
  %v113 = vunpack.c.l.b16 %v33
  %v114 = vunpack.c.l.b16 %v34
  %v115 = vunpack.c.l.b16 %v35
  %v116 = vunpack.c.l.b16 %v36
  %v117 = vunpack.c.l.b16 %v37
  %v118 = vunpack.c.l.b16 %v38
  %v119 = vunpack.c.l.b16 %v39
  %v120 = vunpack.c.l.b16 %v40
  %v121 = vunpack.c.l.b16 %v41
  %v122 = vunpack.c.l.b16 %v42
  %v123 = vunpack.c.l.b16 %v43
  %v124 = vpack.c.b16 %v109, %v108
  %v125 = vpack.c.b16 %v111, %v110
  %v126 = vpack.c.b16 %v113, %v112
  %v127 = vpack.c.b16 %v115, %v114
  %v128 = vpack.c.b16 %v117, %v116
  %v129 = vpack.c.b16 %v119, %v118
  %v130 = vpack.c.b16 %v121, %v120
  %v131 = vpack.c.b16 %v123, %v122
  %140 = vmatprep.subr.bf16.mxu0 0
  %141 = vmatpush1.bf16.xpose.msra.mxu0 %v124
  %142 = vmatprep.subr.bf16.mxu0 0
  %143 = vmatpush1.bf16.xpose.msra.mxu0 %v125
  %144 = vmatprep.subr.bf16.mxu0 0
  %145 = vmatpush1.bf16.xpose.msra.mxu0 %v126
  %146 = vmatprep.subr.bf16.mxu0 0
  %147 = vmatpush1.bf16.xpose.msra.mxu0 %v127
  %148 = vmatprep.subr.bf16.mxu0 0
  %149 = vmatpush1.bf16.xpose.msra.mxu0 %v128
  %150 = vmatprep.subr.bf16.mxu0 0
  %151 = vmatpush1.bf16.xpose.msra.mxu0 %v129
  %152 = vmatprep.subr.bf16.mxu0 0
  %153 = vmatpush1.bf16.xpose.msra.mxu0 %v130
  %154 = vmatprep.subr.bf16.mxu0 0
  %155 = vmatpush1.bf16.xpose.msra.mxu0 %v131
  %156 = vmatprep.subr.bf16.mxu0 0
  %157 = vmatpush1.bf16.xpose.msra.mxu0 0
  %158 = vmatprep.subr.bf16.mxu0 0
  %159 = vmatpush1.bf16.xpose.msra.mxu0 0
  %160 = vmatprep.subr.bf16.mxu0 0
  %161 = vmatpush1.bf16.xpose.msra.mxu0 0
  %162 = vmatprep.subr.bf16.mxu0 0
  %163 = vmatpush1.bf16.xpose.msra.mxu0 0
  %164 = vmatprep.subr.bf16.mxu0 0
  %165 = vmatpush1.bf16.xpose.msra.mxu0 0
  %166 = vmatprep.subr.bf16.mxu0 0
  %167 = vmatpush1.bf16.xpose.msra.mxu0 0
  %168 = vmatprep.subr.bf16.mxu0 0
  %169 = vmatpush1.bf16.xpose.msra.mxu0 0
  %170 = vmatprep.subr.bf16.mxu0 0
  %171 = vmatpush1.bf16.xpose.msra.mxu0 0
  %172 = vmatprep.mubr.bf16.mxu0 0
  %173 = vmatmul.mubr.bf16.gmra.mrb[0].mxu0 %v76
  %v174 = vpop.f32.mrb[0].mxu0
  %v175 = vadd.f32 0.0, %v174
  %v176 = vpop.f32.mrb[0].mxu0
  %v177 = vpop.f32.mrb[0].mxu0
  %v178 = vadd.f32 0.0, %v177
  %v179 = vpop.f32.mrb[0].mxu0
  %180 = vmatprep.mubr.bf16.mxu0 0
  %181 = vmatmul.mubr.bf16.gmra.mrb[0].mxu0 %v77
  %v182 = vpop.f32.mrb[0].mxu0
  %v183 = vadd.f32 0.0, %v182
  %v184 = vpop.f32.mrb[0].mxu0
  %v185 = vpop.f32.mrb[0].mxu0
  %v186 = vadd.f32 0.0, %v185
  %v187 = vpop.f32.mrb[0].mxu0
  %188 = vmatprep.mubr.bf16.mxu0 0
  %189 = vmatmul.mubr.bf16.gmra.mrb[0].mxu0 %v78
  %v190 = vpop.f32.mrb[0].mxu0
  %v191 = vadd.f32 0.0, %v190
  %v192 = vpop.f32.mrb[0].mxu0
  %v193 = vpop.f32.mrb[0].mxu0
  %v194 = vadd.f32 0.0, %v193
  %v195 = vpop.f32.mrb[0].mxu0
  %196 = vmatprep.mubr.bf16.mxu0 0
  %197 = vmatmul.mubr.bf16.gmra.mrb[0].mxu0 %v79
  %v198 = vpop.f32.mrb[0].mxu0
  %v199 = vadd.f32 0.0, %v198
  %v200 = vpop.f32.mrb[0].mxu0
  %v201 = vpop.f32.mrb[0].mxu0
  %v202 = vadd.f32 0.0, %v201
  %v203 = vpop.f32.mrb[0].mxu0
  %204 = vmatprep.mubr.bf16.mxu0 0
  %205 = vmatmul.mubr.bf16.gmra.mrb[0].mxu0 %v80
  %v206 = vpop.f32.mrb[0].mxu0
  %v207 = vadd.f32 0.0, %v206
  %v208 = vpop.f32.mrb[0].mxu0
  %v209 = vpop.f32.mrb[0].mxu0
  %v210 = vadd.f32 0.0, %v209
  %v211 = vpop.f32.mrb[0].mxu0
  %212 = vmatprep.mubr.bf16.mxu0 0
  %213 = vmatmul.mubr.bf16.gmra.mrb[0].mxu0 %v81
  %v214 = vpop.f32.mrb[0].mxu0
  %v215 = vadd.f32 0.0, %v214
  %v216 = vpop.f32.mrb[0].mxu0
  %v217 = vpop.f32.mrb[0].mxu0
  %v218 = vadd.f32 0.0, %v217
  %v219 = vpop.f32.mrb[0].mxu0
  %220 = vmatprep.mubr.bf16.mxu0 0
  %221 = vmatmul.mubr.bf16.gmra.mrb[0].mxu0 %v82
  %v222 = vpop.f32.mrb[0].mxu0
  %v223 = vadd.f32 0.0, %v222
  %v224 = vpop.f32.mrb[0].mxu0
  %v225 = vpop.f32.mrb[0].mxu0
  %v226 = vadd.f32 0.0, %v225
  %v227 = vpop.f32.mrb[0].mxu0
  %228 = vmatprep.mubr.bf16.mxu0 0
  %229 = vmatmul.mubr.bf16.gmra.mrb[0].mxu0 %v83
  %v230 = vpop.f32.mrb[0].mxu0
  %v231 = vadd.f32 0.0, %v230
  %v232 = vpop.f32.mrb[0].mxu0
  %v233 = vpop.f32.mrb[0].mxu0
  %v234 = vadd.f32 0.0, %v233
  %v235 = vpop.f32.mrb[0].mxu0
  %236 = vdwg.mxu0
  %v237 = vunpack.c.l.bf16 %v12
  %v238 = vunpack.c.l.bf16 %v13
  %v239 = vunpack.c.l.bf16 %v14
  %v240 = vunpack.c.l.bf16 %v15
  %v241 = vunpack.c.l.bf16 %v16
  %v242 = vunpack.c.l.bf16 %v17
  %v243 = vunpack.c.l.bf16 %v18
  %v244 = vunpack.c.l.bf16 %v19
  %v245 = vunpack.c.l.bf16 %v20
  %v246 = vunpack.c.l.bf16 %v21
  %v247 = vunpack.c.l.bf16 %v22
  %v248 = vunpack.c.l.bf16 %v23
  %v249 = vunpack.c.l.bf16 %v24
  %v250 = vunpack.c.l.bf16 %v25
  %v251 = vunpack.c.l.bf16 %v26
  %v252 = vunpack.c.l.bf16 %v27
  %v253 = vunpack.c.l.bf16 %v28
  %v254 = vunpack.c.l.bf16 %v29
  %v255 = vunpack.c.l.bf16 %v30
  %v256 = vunpack.c.l.bf16 %v31
  %v257 = vunpack.c.l.bf16 %v32
  %v258 = vunpack.c.l.bf16 %v33
  %v259 = vunpack.c.l.bf16 %v34
  %v260 = vunpack.c.l.bf16 %v35
  %v261 = vunpack.c.l.bf16 %v36
  %v262 = vunpack.c.l.bf16 %v37
  %v263 = vunpack.c.l.bf16 %v38
  %v264 = vunpack.c.l.bf16 %v39
  %v265 = vunpack.c.l.bf16 %v40
  %v266 = vunpack.c.l.bf16 %v41
  %v267 = vunpack.c.l.bf16 %v42
  %v268 = vunpack.c.l.bf16 %v43
  %v269 = vmul.f32 %v237, %v237
  %v270 = vmul.f32 %v238, %v238
  %v271 = vmul.f32 %v239, %v239
  %v272 = vmul.f32 %v240, %v240
  %v273 = vmul.f32 %v241, %v241
  %v274 = vmul.f32 %v242, %v242
  %v275 = vmul.f32 %v243, %v243
  %v276 = vmul.f32 %v244, %v244
  %v277 = vmul.f32 %v245, %v245
  %v278 = vmul.f32 %v246, %v246
  %v279 = vmul.f32 %v247, %v247
  %v280 = vmul.f32 %v248, %v248
  %v281 = vmul.f32 %v249, %v249
  %v282 = vmul.f32 %v250, %v250
  %v283 = vmul.f32 %v251, %v251
  %v284 = vmul.f32 %v252, %v252
  %285 = vadd.xlane.f32.xlu0 %v269
  %v286 = vpop.xlane.xlu0 %285
  %287 = vadd.xlane.f32.xlu0 %v270
  %v288 = vpop.xlane.xlu0 %287
  %289 = vadd.xlane.f32.xlu0 %v271
  %v290 = vpop.xlane.xlu0 %289
  %291 = vadd.xlane.f32.xlu0 %v272
  %v292 = vpop.xlane.xlu0 %291
  %293 = vadd.xlane.f32.xlu0 %v273
  %v294 = vpop.xlane.xlu0 %293
  %295 = vadd.xlane.f32.xlu0 %v274
  %v296 = vpop.xlane.xlu0 %295
  %297 = vadd.xlane.f32.xlu0 %v275
  %v298 = vpop.xlane.xlu0 %297
  %299 = vadd.xlane.f32.xlu0 %v276
  %v300 = vpop.xlane.xlu0 %299
  %301 = vadd.xlane.f32.xlu0 %v277
  %v302 = vpop.xlane.xlu0 %301
  %303 = vadd.xlane.f32.xlu0 %v278
  %v304 = vpop.xlane.xlu0 %303
  %305 = vadd.xlane.f32.xlu0 %v279
  %v306 = vpop.xlane.xlu0 %305
  %307 = vadd.xlane.f32.xlu0 %v280
  %v308 = vpop.xlane.xlu0 %307
  %309 = vadd.xlane.f32.xlu0 %v281
  %v310 = vpop.xlane.xlu0 %309
  %311 = vadd.xlane.f32.xlu0 %v282
  %v312 = vpop.xlane.xlu0 %311
  %313 = vadd.xlane.f32.xlu0 %v283
  %v314 = vpop.xlane.xlu0 %313
  %315 = vadd.xlane.f32.xlu0 %v284
  %v316 = vpop.xlane.xlu0 %315
  %v317 = vmul.f32 %v253, %v253
  %v318 = vmul.f32 %v254, %v254
  %v319 = vmul.f32 %v255, %v255
  %v320 = vmul.f32 %v256, %v256
  %v321 = vmul.f32 %v257, %v257
  %v322 = vmul.f32 %v258, %v258
  %v323 = vmul.f32 %v259, %v259
  %v324 = vmul.f32 %v260, %v260
  %v325 = vmul.f32 %v261, %v261
  %v326 = vmul.f32 %v262, %v262
  %v327 = vmul.f32 %v263, %v263
  %v328 = vmul.f32 %v264, %v264
  %v329 = vmul.f32 %v265, %v265
  %v330 = vmul.f32 %v266, %v266
  %v331 = vmul.f32 %v267, %v267
  %v332 = vmul.f32 %v268, %v268
  %333 = vmatprep.subr.mxu0 0.0
  %334 = vmatpush1.xpose.msra.mxu0 %v317
  %335 = vmatprep.subr.mxu0 0.0
  %336 = vmatpush1.xpose.msra.mxu0 %v318
  %337 = vmatprep.subr.mxu0 0.0
  %338 = vmatpush1.xpose.msra.mxu0 %v319
  %339 = vmatprep.subr.mxu0 0.0
  %340 = vmatpush1.xpose.msra.mxu0 %v320
  %341 = vmatprep.subr.mxu0 0.0
  %342 = vmatpush1.xpose.msra.mxu0 %v321
  %343 = vmatprep.subr.mxu0 0.0
  %344 = vmatpush1.xpose.msra.mxu0 %v322
  %345 = vmatprep.subr.mxu0 0.0
  %346 = vmatpush1.xpose.msra.mxu0 %v323
  %347 = vmatprep.subr.mxu0 0.0
  %348 = vmatpush1.xpose.msra.mxu0 %v324
  %349 = vmatprep.subr.mxu0 0.0
  %350 = vmatpush1.xpose.msra.mxu0 %v325
  %351 = vmatprep.subr.mxu0 0.0
  %352 = vmatpush1.xpose.msra.mxu0 %v326
  %353 = vmatprep.subr.mxu0 0.0
  %354 = vmatpush1.xpose.msra.mxu0 %v327
  %355 = vmatprep.subr.mxu0 0.0
  %356 = vmatpush1.xpose.msra.mxu0 %v328
  %357 = vmatprep.subr.mxu0 0.0
  %358 = vmatpush1.xpose.msra.mxu0 %v329
  %359 = vmatprep.subr.mxu0 0.0
  %360 = vmatpush1.xpose.msra.mxu0 %v330
  %361 = vmatprep.subr.mxu0 0.0
  %362 = vmatpush1.xpose.msra.mxu0 %v331
  %363 = vmatprep.subr.mxu0 0.0
  %364 = vmatpush1.xpose.msra.mxu0 %v332
  %365 = vmatprep.subr.mxu0 0.0
  %366 = vmatpush1.xpose.msra.mxu0 0.0
  %367 = vmatprep.subr.mxu0 0.0
  %368 = vmatpush1.xpose.msra.mxu0 0.0
  %369 = vmatprep.subr.mxu0 0.0
  %370 = vmatpush1.xpose.msra.mxu0 0.0
  %371 = vmatprep.subr.mxu0 0.0
  %372 = vmatpush1.xpose.msra.mxu0 0.0
  %373 = vmatprep.subr.mxu0 0.0
  %374 = vmatpush1.xpose.msra.mxu0 0.0
  %375 = vmatprep.subr.mxu0 0.0
  %376 = vmatpush1.xpose.msra.mxu0 0.0
  %377 = vmatprep.subr.mxu0 0.0
  %378 = vmatpush1.xpose.msra.mxu0 0.0
  %379 = vmatprep.subr.mxu0 0.0
  %380 = vmatpush1.xpose.msra.mxu0 0.0
  %381 = vmatprep.subr.mxu0 0.0
  %382 = vmatpush1.xpose.msra.mxu0 0.0
  %383 = vmatprep.subr.mxu0 0.0
  %384 = vmatpush1.xpose.msra.mxu0 0.0
  %385 = vmatprep.subr.mxu0 0.0
  %386 = vmatpush1.xpose.msra.mxu0 0.0
  %387 = vmatprep.subr.mxu0 0.0
  %388 = vmatpush1.xpose.msra.mxu0 0.0
  %389 = vmatprep.subr.mxu0 0.0
  %390 = vmatpush1.xpose.msra.mxu0 0.0
  %391 = vmatprep.subr.mxu0 0.0
  %392 = vmatpush1.xpose.msra.mxu0 0.0
  %393 = vmatprep.subr.mxu0 0.0
  %394 = vmatpush1.xpose.msra.mxu0 0.0
  %395 = vmatprep.subr.mxu0 0.0
  %396 = vmatpush1.xpose.msra.mxu0 0.0
  %397 = vmatprep.mubr.f32.mxu0 0.0
  %398 = vmatmul.mubr.f32.gmra.mrb[0].mxu0 1.0
  %v399 = vpop.f32.mrb[0].mxu0
  %v400 = vadd.f32 0.0, %v399
  %v401 = vpop.f32.mrb[0].mxu0
  %402 = vdwg.mxu0
  %v403 = vlaneseq
  %v404 = vshrl.u32 %v403, 7
  %v405 = vsub.s32 0, %v404
  %v406 = vrot.slane %v400, %v405
  %v407 = vadd.f32 %v286, %v406
  %v408 = vadd.f32 %v288, %v406
  %v409 = vadd.f32 %v290, %v406
  %v410 = vadd.f32 %v292, %v406
  %v411 = vadd.f32 %v294, %v406
  %v412 = vadd.f32 %v296, %v406
  %v413 = vadd.f32 %v298, %v406
  %v414 = vadd.f32 %v300, %v406
  %v415 = vadd.f32 %v302, %v406
  %v416 = vadd.f32 %v304, %v406
  %v417 = vadd.f32 %v306, %v406
  %v418 = vadd.f32 %v308, %v406
  %v419 = vadd.f32 %v310, %v406
  %v420 = vadd.f32 %v312, %v406
  %v421 = vadd.f32 %v314, %v406
  %v422 = vadd.f32 %v316, %v406
  %v423 = vmul.f32 %v175, 2.0
  %v424 = vmul.f32 %v178, 2.0
  %v425 = vmul.f32 %v183, 2.0
  %v426 = vmul.f32 %v186, 2.0
  %v427 = vmul.f32 %v191, 2.0
  %v428 = vmul.f32 %v194, 2.0
  %v429 = vmul.f32 %v199, 2.0
  %v430 = vmul.f32 %v202, 2.0
  %v431 = vmul.f32 %v207, 2.0
  %v432 = vmul.f32 %v210, 2.0
  %v433 = vmul.f32 %v215, 2.0
  %v434 = vmul.f32 %v218, 2.0
  %v435 = vmul.f32 %v223, 2.0
  %v436 = vmul.f32 %v226, 2.0
  %v437 = vmul.f32 %v231, 2.0
  %v438 = vmul.f32 %v234, 2.0
  %v439 = vsub.f32 %v407, %v423
  %v440 = vsub.f32 %v408, %v424
  %v441 = vsub.f32 %v409, %v425
  %v442 = vsub.f32 %v410, %v426
  %v443 = vsub.f32 %v411, %v427
  %v444 = vsub.f32 %v412, %v428
  %v445 = vsub.f32 %v413, %v429
  %v446 = vsub.f32 %v414, %v430
  %v447 = vsub.f32 %v415, %v431
  %v448 = vsub.f32 %v416, %v432
  %v449 = vsub.f32 %v417, %v433
  %v450 = vsub.f32 %v418, %v434
  %v451 = vsub.f32 %v419, %v435
  %v452 = vsub.f32 %v420, %v436
  %v453 = vsub.f32 %v421, %v437
  %v454 = vsub.f32 %v422, %v438
  %455 = vst [vmem:[%s2] sm:$0xff] %v439
  %456 = vst [vmem:[%s2 + $0x8] sm:$0xff] %v440
  %457 = vst [vmem:[%s2 + $0x10] sm:$0xff] %v441
  %458 = vst [vmem:[%s2 + $0x18] sm:$0xff] %v442
  %459 = vst [vmem:[%s2 + $0x20] sm:$0xff] %v443
  %460 = vst [vmem:[%s2 + $0x28] sm:$0xff] %v444
  %461 = vst [vmem:[%s2 + $0x30] sm:$0xff] %v445
  %462 = vst [vmem:[%s2 + $0x38] sm:$0xff] %v446
  %463 = vst [vmem:[%s2 + $0x40] sm:$0xff] %v447
  %464 = vst [vmem:[%s2 + $0x48] sm:$0xff] %v448
  %465 = vst [vmem:[%s2 + $0x50] sm:$0xff] %v449
  %466 = vst [vmem:[%s2 + $0x58] sm:$0xff] %v450
  %467 = vst [vmem:[%s2 + $0x60] sm:$0xff] %v451
  %468 = vst [vmem:[%s2 + $0x68] sm:$0xff] %v452
  %469 = vst [vmem:[%s2 + $0x70] sm:$0xff] %v453
  %470 = vst [vmem:[%s2 + $0x78] sm:$0xff] %v454
  // Predicated region
  $region10: #{cpn_cr_loss.3} parent=0 // pred_check
    _
  $region11: #{cpn_cr_loss.3} parent=0 // pred_check_branch
    %472 = sbr.rel (0) target = $region13
  $region12: #{cpn_cr_loss.3} parent=0 // pred_region
    _
  $region13: #{cpn_cr_loss.3} parent=0 // pred_fallthru
    _
  // Predicated region
  $region14: #{cpn_cr_loss.3} parent=0 // pred_check
    _
  $region15: #{cpn_cr_loss.3} parent=0 // pred_check_branch
    %474 = sbr.rel (0) target = $region17
  $region16: #{cpn_cr_loss.3} parent=0 // pred_region
    _
  $region17: #{cpn_cr_loss.3} parent=0 // pred_fallthru
    _

// kernel: cpn_cr_loss.2
$region0: #{cpn_cr_loss.2}
  #allocation0 [shape = 'u32[]', space=smem, size = 0x4, offset = 0x4, fixed_abs, tag = 'smem constant byte address 0x4 - core index']
  #allocation1 [shape = 'u32[144,128]{1,0:T(1,128)}', space=vmem, size = 0x12000, scoped, tag = 'internal scratch']
  #allocation2 [shape = 'f32[128,128]{1,0:T(8,128)}', space=vmem, size = 0x10000, scoped, tag = 'scratch operand']
  %s0 = inlined_call_operand.vmem [shape: bf16[128,256], index: 0, kind: input, shape index: {}]
  %s1 = inlined_call_operand.vmem [shape: bf16[256,128], index: 1, kind: input, shape index: {}]
  %s2 = inlined_call_operand.vmem [shape: f32[1,128], index: 2, kind: input, shape index: {}]
  %s3 = inlined_call_operand.vmem [shape: bf16[128,128], index: 3, kind: output, shape index: {}]
  %s4 = sld [smem:[#allocation0]]
  $region30: #{cpn_cr_loss.2} parent=0
    _
  %s6 = ssub.s32 1, %s4
  %s7 = scalar_select 0, %s6, %s4
  // Predicated region
  $region2: #{cpn_cr_loss.2} parent=0 // pred_check
    _
  $region3: #{cpn_cr_loss.2} parent=0 // pred_check_branch
    %9 = sbr.rel (0) target = $region5
  $region4: #{cpn_cr_loss.2} parent=0 // pred_region
    _
  $region5: #{cpn_cr_loss.2} parent=0 // pred_fallthru
    _
  // Predicated region
  $region6: #{cpn_cr_loss.2} parent=0 // pred_check
    _
  $region7: #{cpn_cr_loss.2} parent=0 // pred_check_branch
    %11 = sbr.rel (0) target = $region9
  $region8: #{cpn_cr_loss.2} parent=0 // pred_region
    _
  $region9: #{cpn_cr_loss.2} parent=0 // pred_fallthru
    _
  // Predicated region
  $region10: #{cpn_cr_loss.2} parent=0 // pred_check
    _
  $region11: #{cpn_cr_loss.2} parent=0 // pred_check_branch
    %13 = sbr.rel (0) target = $region13
  $region12: #{cpn_cr_loss.2} parent=0 // pred_region
    _
  $region13: #{cpn_cr_loss.2} parent=0 // pred_fallthru
    _
  %p15 = scmp.eq.s32.totalorder 0, 0
  // Predicated region
  $region14: #{cpn_cr_loss.2} parent=0 // pred_check
    %p16 = pneg %p15
  $region15: #{cpn_cr_loss.2} parent=0 // pred_check_branch
    %18 = sbr.rel (%p16) target = $region17
  $region16: #{cpn_cr_loss.2} parent=0 // pred_region
    %19 = vst [vmem:[#allocation2] sm:$0xff] 0.0
    %20 = vst [vmem:[#allocation2 + $0x8] sm:$0xff] 0.0
    %21 = vst [vmem:[#allocation2 + $0x10] sm:$0xff] 0.0
    %22 = vst [vmem:[#allocation2 + $0x18] sm:$0xff] 0.0
    %23 = vst [vmem:[#allocation2 + $0x20] sm:$0xff] 0.0
    %24 = vst [vmem:[#allocation2 + $0x28] sm:$0xff] 0.0
    %25 = vst [vmem:[#allocation2 + $0x30] sm:$0xff] 0.0
    %26 = vst [vmem:[#allocation2 + $0x38] sm:$0xff] 0.0
    %27 = vst [vmem:[#allocation2 + $0x40] sm:$0xff] 0.0
    %28 = vst [vmem:[#allocation2 + $0x48] sm:$0xff] 0.0
    %29 = vst [vmem:[#allocation2 + $0x50] sm:$0xff] 0.0
    %30 = vst [vmem:[#allocation2 + $0x58] sm:$0xff] 0.0
    %31 = vst [vmem:[#allocation2 + $0x60] sm:$0xff] 0.0
    %32 = vst [vmem:[#allocation2 + $0x68] sm:$0xff] 0.0
    %33 = vst [vmem:[#allocation2 + $0x70] sm:$0xff] 0.0
    %34 = vst [vmem:[#allocation2 + $0x78] sm:$0xff] 0.0
  $region17: #{cpn_cr_loss.2} parent=0 // pred_fallthru
    _
  %v35 = vld [vmem:[#allocation2] sm:$0xff]
  %v36 = vld [vmem:[#allocation2 + $0x8] sm:$0xff]
  %v37 = vld [vmem:[#allocation2 + $0x10] sm:$0xff]
  %v38 = vld [vmem:[#allocation2 + $0x18] sm:$0xff]
  %v39 = vld [vmem:[#allocation2 + $0x20] sm:$0xff]
  %v40 = vld [vmem:[#allocation2 + $0x28] sm:$0xff]
  %v41 = vld [vmem:[#allocation2 + $0x30] sm:$0xff]
  %v42 = vld [vmem:[#allocation2 + $0x38] sm:$0xff]
  %v43 = vld [vmem:[#allocation2 + $0x40] sm:$0xff]
  %v44 = vld [vmem:[#allocation2 + $0x48] sm:$0xff]
  %v45 = vld [vmem:[#allocation2 + $0x50] sm:$0xff]
  %v46 = vld [vmem:[#allocation2 + $0x58] sm:$0xff]
  %v47 = vld [vmem:[#allocation2 + $0x60] sm:$0xff]
  %v48 = vld [vmem:[#allocation2 + $0x68] sm:$0xff]
  %v49 = vld [vmem:[#allocation2 + $0x70] sm:$0xff]
  %v50 = vld [vmem:[#allocation2 + $0x78] sm:$0xff]
  %v51 = vld [vmem:[%s0] sm:$0xff]
  %v52 = vld [vmem:[%s0 + $0x8] sm:$0xff]
  %v53 = vld [vmem:[%s0 + $0x10] sm:$0xff]
  %v54 = vld [vmem:[%s0 + $0x18] sm:$0xff]
  %v55 = vld [vmem:[%s0 + $0x20] sm:$0xff]
  %v56 = vld [vmem:[%s0 + $0x28] sm:$0xff]
  %v57 = vld [vmem:[%s0 + $0x30] sm:$0xff]
  %v58 = vld [vmem:[%s0 + $0x38] sm:$0xff]
  %v59 = vld [vmem:[%s0 + $0x40] sm:$0xff]
  %v60 = vld [vmem:[%s0 + $0x48] sm:$0xff]
  %v61 = vld [vmem:[%s0 + $0x50] sm:$0xff]
  %v62 = vld [vmem:[%s0 + $0x58] sm:$0xff]
  %v63 = vld [vmem:[%s0 + $0x60] sm:$0xff]
  %v64 = vld [vmem:[%s0 + $0x68] sm:$0xff]
  %v65 = vld [vmem:[%s0 + $0x70] sm:$0xff]
  %v66 = vld [vmem:[%s0 + $0x78] sm:$0xff]
  %v67 = vld [vmem:[%s1] sm:$0xf]
  %v68 = vld [vmem:[%s1 + $0x4] sm:$0xf]
  %v69 = vld [vmem:[%s1 + $0x8] sm:$0xf]
  %v70 = vld [vmem:[%s1 + $0xc] sm:$0xf]
  %v71 = vld [vmem:[%s1 + $0x10] sm:$0xf]
  %v72 = vld [vmem:[%s1 + $0x14] sm:$0xf]
  %v73 = vld [vmem:[%s1 + $0x18] sm:$0xf]
  %v74 = vld [vmem:[%s1 + $0x1c] sm:$0xf]
  %v75 = vld [vmem:[%s1 + $0x20] sm:$0xf]
  %v76 = vld [vmem:[%s1 + $0x24] sm:$0xf]
  %v77 = vld [vmem:[%s1 + $0x28] sm:$0xf]
  %v78 = vld [vmem:[%s1 + $0x2c] sm:$0xf]
  %v79 = vld [vmem:[%s1 + $0x30] sm:$0xf]
  %v80 = vld [vmem:[%s1 + $0x34] sm:$0xf]
  %v81 = vld [vmem:[%s1 + $0x38] sm:$0xf]
  %v82 = vld [vmem:[%s1 + $0x3c] sm:$0xf]
  %v83 = vld [vmem:[%s1 + $0x40] sm:$0xf]
  %v84 = vld [vmem:[%s1 + $0x44] sm:$0xf]
  %v85 = vld [vmem:[%s1 + $0x48] sm:$0xf]
  %v86 = vld [vmem:[%s1 + $0x4c] sm:$0xf]
  %v87 = vld [vmem:[%s1 + $0x50] sm:$0xf]
  %v88 = vld [vmem:[%s1 + $0x54] sm:$0xf]
  %v89 = vld [vmem:[%s1 + $0x58] sm:$0xf]
  %v90 = vld [vmem:[%s1 + $0x5c] sm:$0xf]
  %v91 = vld [vmem:[%s1 + $0x60] sm:$0xf]
  %v92 = vld [vmem:[%s1 + $0x64] sm:$0xf]
  %v93 = vld [vmem:[%s1 + $0x68] sm:$0xf]
  %v94 = vld [vmem:[%s1 + $0x6c] sm:$0xf]
  %v95 = vld [vmem:[%s1 + $0x70] sm:$0xf]
  %v96 = vld [vmem:[%s1 + $0x74] sm:$0xf]
  %v97 = vld [vmem:[%s1 + $0x78] sm:$0xf]
  %v98 = vld [vmem:[%s1 + $0x7c] sm:$0xf]
  %v115 = vunpack.c.l.b16 %v51
  %v116 = vunpack.c.h.b16 %v51
  %v117 = vunpack.c.l.b16 %v52
  %v118 = vunpack.c.h.b16 %v52
  %v119 = vunpack.c.l.b16 %v53
  %v120 = vunpack.c.h.b16 %v53
  %v121 = vunpack.c.l.b16 %v54
  %v122 = vunpack.c.h.b16 %v54
  %v123 = vunpack.c.l.b16 %v55
  %v124 = vunpack.c.h.b16 %v55
  %v125 = vunpack.c.l.b16 %v56
  %v126 = vunpack.c.h.b16 %v56
  %v127 = vunpack.c.l.b16 %v57
  %v128 = vunpack.c.h.b16 %v57
  %v129 = vunpack.c.l.b16 %v58
  %v130 = vunpack.c.h.b16 %v58
  %v131 = vunpack.c.l.b16 %v59
  %v132 = vunpack.c.h.b16 %v59
  %v133 = vunpack.c.l.b16 %v60
  %v134 = vunpack.c.h.b16 %v60
  %v135 = vunpack.c.l.b16 %v61
  %v136 = vunpack.c.h.b16 %v61
  %v137 = vunpack.c.l.b16 %v62
  %v138 = vunpack.c.h.b16 %v62
  %v139 = vunpack.c.l.b16 %v63
  %v140 = vunpack.c.h.b16 %v63
  %v141 = vunpack.c.l.b16 %v64
  %v142 = vunpack.c.h.b16 %v64
  %v143 = vunpack.c.l.b16 %v65
  %v144 = vunpack.c.h.b16 %v65
  %v145 = vunpack.c.l.b16 %v66
  %v146 = vunpack.c.h.b16 %v66
  %v147 = vpack.c.b16 %v117, %v115
  %v148 = vpack.c.b16 %v118, %v116
  %v149 = vpack.c.b16 %v121, %v119
  %v150 = vpack.c.b16 %v122, %v120
  %v151 = vpack.c.b16 %v125, %v123
  %v152 = vpack.c.b16 %v126, %v124
  %v153 = vpack.c.b16 %v129, %v127
  %v154 = vpack.c.b16 %v130, %v128
  %v155 = vpack.c.b16 %v133, %v131
  %v156 = vpack.c.b16 %v134, %v132
  %v157 = vpack.c.b16 %v137, %v135
  %v158 = vpack.c.b16 %v138, %v136
  %v159 = vpack.c.b16 %v141, %v139
  %v160 = vpack.c.b16 %v142, %v140
  %v161 = vpack.c.b16 %v145, %v143
  %v162 = vpack.c.b16 %v146, %v144
  %v211 = vunpack.c.l.b16 %v67
  %v212 = vunpack.c.l.b16 %v68
  %v213 = vunpack.c.l.b16 %v69
  %v214 = vunpack.c.l.b16 %v70
  %v215 = vunpack.c.l.b16 %v71
  %v216 = vunpack.c.l.b16 %v72
  %v217 = vunpack.c.l.b16 %v73
  %v218 = vunpack.c.l.b16 %v74
  %v219 = vunpack.c.l.b16 %v75
  %v220 = vunpack.c.l.b16 %v76
  %v221 = vunpack.c.l.b16 %v77
  %v222 = vunpack.c.l.b16 %v78
  %v223 = vunpack.c.l.b16 %v79
  %v224 = vunpack.c.l.b16 %v80
  %v225 = vunpack.c.l.b16 %v81
  %v226 = vunpack.c.l.b16 %v82
  %v227 = vunpack.c.l.b16 %v83
  %v228 = vunpack.c.l.b16 %v84
  %v229 = vunpack.c.l.b16 %v85
  %v230 = vunpack.c.l.b16 %v86
  %v231 = vunpack.c.l.b16 %v87
  %v232 = vunpack.c.l.b16 %v88
  %v233 = vunpack.c.l.b16 %v89
  %v234 = vunpack.c.l.b16 %v90
  %v235 = vunpack.c.l.b16 %v91
  %v236 = vunpack.c.l.b16 %v92
  %v237 = vunpack.c.l.b16 %v93
  %v238 = vunpack.c.l.b16 %v94
  %v239 = vunpack.c.l.b16 %v95
  %v240 = vunpack.c.l.b16 %v96
  %v241 = vunpack.c.l.b16 %v97
  %v242 = vunpack.c.l.b16 %v98
  %v243 = vpack.c.b16 %v212, %v211
  %v244 = vpack.c.b16 %v214, %v213
  %v245 = vpack.c.b16 %v216, %v215
  %v246 = vpack.c.b16 %v218, %v217
  %v247 = vpack.c.b16 %v220, %v219
  %v248 = vpack.c.b16 %v222, %v221
  %v249 = vpack.c.b16 %v224, %v223
  %v250 = vpack.c.b16 %v226, %v225
  %v251 = vpack.c.b16 %v228, %v227
  %v252 = vpack.c.b16 %v230, %v229
  %v253 = vpack.c.b16 %v232, %v231
  %v254 = vpack.c.b16 %v234, %v233
  %v255 = vpack.c.b16 %v236, %v235
  %v256 = vpack.c.b16 %v238, %v237
  %v257 = vpack.c.b16 %v240, %v239
  %v258 = vpack.c.b16 %v242, %v241
  %275 = vmatprep.subr.bf16.mxu0 0
  %276 = vmatpush1.bf16.msra.mxu0 %v243
  %277 = vmatprep.subr.bf16.mxu0 0
  %278 = vmatpush1.bf16.msra.mxu0 %v244
  %279 = vmatprep.subr.bf16.mxu0 0
  %280 = vmatpush1.bf16.msra.mxu0 %v245
  %281 = vmatprep.subr.bf16.mxu0 0
  %282 = vmatpush1.bf16.msra.mxu0 %v246
  %283 = vmatprep.subr.bf16.mxu0 0
  %284 = vmatpush1.bf16.msra.mxu0 %v247
  %285 = vmatprep.subr.bf16.mxu0 0
  %286 = vmatpush1.bf16.msra.mxu0 %v248
  %287 = vmatprep.subr.bf16.mxu0 0
  %288 = vmatpush1.bf16.msra.mxu0 %v249
  %289 = vmatprep.subr.bf16.mxu0 0
  %290 = vmatpush1.bf16.msra.mxu0 %v250
  %291 = vmatprep.subr.bf16.mxu0 0
  %292 = vmatpush1.bf16.msra.mxu0 %v251
  %293 = vmatprep.subr.bf16.mxu0 0
  %294 = vmatpush1.bf16.msra.mxu0 %v252
  %295 = vmatprep.subr.bf16.mxu0 0
  %296 = vmatpush1.bf16.msra.mxu0 %v253
  %297 = vmatprep.subr.bf16.mxu0 0
  %298 = vmatpush1.bf16.msra.mxu0 %v254
  %299 = vmatprep.subr.bf16.mxu0 0
  %300 = vmatpush1.bf16.msra.mxu0 %v255
  %301 = vmatprep.subr.bf16.mxu0 0
  %302 = vmatpush1.bf16.msra.mxu0 %v256
  %303 = vmatprep.subr.bf16.mxu0 0
  %304 = vmatpush1.bf16.msra.mxu0 %v257
  %305 = vmatprep.subr.bf16.mxu0 0
  %306 = vmatpush1.bf16.msra.mxu0 %v258
  %307 = vmatprep.mubr.bf16.mxu0 %v148
  %308 = vmatmul.mubr.bf16.gmra.mrb[0].mxu0 %v147
  %v309 = vpop.f32.mrb[0].mxu0
  %v310 = vadd.f32 0.0, %v309
  %v311 = vpop.f32.mrb[0].mxu0
  %v312 = vpop.f32.mrb[0].mxu0
  %v313 = vadd.f32 0.0, %v312
  %v314 = vpop.f32.mrb[0].mxu0
  %315 = vmatprep.mubr.bf16.mxu0 %v150
  %316 = vmatmul.mubr.bf16.gmra.mrb[0].mxu0 %v149
  %v317 = vpop.f32.mrb[0].mxu0
  %v318 = vadd.f32 0.0, %v317
  %v319 = vpop.f32.mrb[0].mxu0
  %v320 = vpop.f32.mrb[0].mxu0
  %v321 = vadd.f32 0.0, %v320
  %v322 = vpop.f32.mrb[0].mxu0
  %323 = vmatprep.mubr.bf16.mxu0 %v152
  %324 = vmatmul.mubr.bf16.gmra.mrb[0].mxu0 %v151
  %v325 = vpop.f32.mrb[0].mxu0
  %v326 = vadd.f32 0.0, %v325
  %v327 = vpop.f32.mrb[0].mxu0
  %v328 = vpop.f32.mrb[0].mxu0
  %v329 = vadd.f32 0.0, %v328
  %v330 = vpop.f32.mrb[0].mxu0
  %331 = vmatprep.mubr.bf16.mxu0 %v154
  %332 = vmatmul.mubr.bf16.gmra.mrb[0].mxu0 %v153
  %v333 = vpop.f32.mrb[0].mxu0
  %v334 = vadd.f32 0.0, %v333
  %v335 = vpop.f32.mrb[0].mxu0
  %v336 = vpop.f32.mrb[0].mxu0
  %v337 = vadd.f32 0.0, %v336
  %v338 = vpop.f32.mrb[0].mxu0
  %339 = vmatprep.mubr.bf16.mxu0 %v156
  %340 = vmatmul.mubr.bf16.gmra.mrb[0].mxu0 %v155
  %v341 = vpop.f32.mrb[0].mxu0
  %v342 = vadd.f32 0.0, %v341
  %v343 = vpop.f32.mrb[0].mxu0
  %v344 = vpop.f32.mrb[0].mxu0
  %v345 = vadd.f32 0.0, %v344
  %v346 = vpop.f32.mrb[0].mxu0
  %347 = vmatprep.mubr.bf16.mxu0 %v158
  %348 = vmatmul.mubr.bf16.gmra.mrb[0].mxu0 %v157
  %v349 = vpop.f32.mrb[0].mxu0
  %v350 = vadd.f32 0.0, %v349
  %v351 = vpop.f32.mrb[0].mxu0
  %v352 = vpop.f32.mrb[0].mxu0
  %v353 = vadd.f32 0.0, %v352
  %v354 = vpop.f32.mrb[0].mxu0
  %355 = vmatprep.mubr.bf16.mxu0 %v160
  %356 = vmatmul.mubr.bf16.gmra.mrb[0].mxu0 %v159
  %v357 = vpop.f32.mrb[0].mxu0
  %v358 = vadd.f32 0.0, %v357
  %v359 = vpop.f32.mrb[0].mxu0
  %v360 = vpop.f32.mrb[0].mxu0
  %v361 = vadd.f32 0.0, %v360
  %v362 = vpop.f32.mrb[0].mxu0
  %363 = vmatprep.mubr.bf16.mxu0 %v162
  %364 = vmatmul.mubr.bf16.gmra.mrb[0].mxu0 %v161
  %v365 = vpop.f32.mrb[0].mxu0
  %v366 = vadd.f32 0.0, %v365
  %v367 = vpop.f32.mrb[0].mxu0
  %v368 = vpop.f32.mrb[0].mxu0
  %v369 = vadd.f32 0.0, %v368
  %v370 = vpop.f32.mrb[0].mxu0
  %371 = vdwg.mxu0
  %v372 = vadd.f32 %v35, %v310
  %v373 = vadd.f32 %v36, %v313
  %v374 = vadd.f32 %v37, %v318
  %v375 = vadd.f32 %v38, %v321
  %v376 = vadd.f32 %v39, %v326
  %v377 = vadd.f32 %v40, %v329
  %v378 = vadd.f32 %v41, %v334
  %v379 = vadd.f32 %v42, %v337
  %v380 = vadd.f32 %v43, %v342
  %v381 = vadd.f32 %v44, %v345
  %v382 = vadd.f32 %v45, %v350
  %v383 = vadd.f32 %v46, %v353
  %v384 = vadd.f32 %v47, %v358
  %v385 = vadd.f32 %v48, %v361
  %v386 = vadd.f32 %v49, %v366
  %v387 = vadd.f32 %v50, %v369
  %388 = vst [vmem:[#allocation2] sm:$0xff] %v372
  %389 = vst [vmem:[#allocation2 + $0x8] sm:$0xff] %v373
  %390 = vst [vmem:[#allocation2 + $0x10] sm:$0xff] %v374
  %391 = vst [vmem:[#allocation2 + $0x18] sm:$0xff] %v375
  %392 = vst [vmem:[#allocation2 + $0x20] sm:$0xff] %v376
  %393 = vst [vmem:[#allocation2 + $0x28] sm:$0xff] %v377
  %394 = vst [vmem:[#allocation2 + $0x30] sm:$0xff] %v378
  %395 = vst [vmem:[#allocation2 + $0x38] sm:$0xff] %v379
  %396 = vst [vmem:[#allocation2 + $0x40] sm:$0xff] %v380
  %397 = vst [vmem:[#allocation2 + $0x48] sm:$0xff] %v381
  %398 = vst [vmem:[#allocation2 + $0x50] sm:$0xff] %v382
  %399 = vst [vmem:[#allocation2 + $0x58] sm:$0xff] %v383
  %400 = vst [vmem:[#allocation2 + $0x60] sm:$0xff] %v384
  %401 = vst [vmem:[#allocation2 + $0x68] sm:$0xff] %v385
  %402 = vst [vmem:[#allocation2 + $0x70] sm:$0xff] %v386
  %403 = vst [vmem:[#allocation2 + $0x78] sm:$0xff] %v387
  // Predicated region
  $region18: #{cpn_cr_loss.2} parent=0 // pred_check
    %p404 = pneg %p15
  $region19: #{cpn_cr_loss.2} parent=0 // pred_check_branch
    %406 = sbr.rel (%p404) target = $region21
  $region20: #{cpn_cr_loss.2} parent=0 // pred_region
    %v407 = vld [vmem:[#allocation2] sm:$0xff]
    %v408 = vld [vmem:[#allocation2 + $0x8] sm:$0xff]
    %v409 = vld [vmem:[#allocation2 + $0x10] sm:$0xff]
    %v410 = vld [vmem:[#allocation2 + $0x18] sm:$0xff]
    %v411 = vld [vmem:[#allocation2 + $0x20] sm:$0xff]
    %v412 = vld [vmem:[#allocation2 + $0x28] sm:$0xff]
    %v413 = vld [vmem:[#allocation2 + $0x30] sm:$0xff]
    %v414 = vld [vmem:[#allocation2 + $0x38] sm:$0xff]
    %v415 = vld [vmem:[#allocation2 + $0x40] sm:$0xff]
    %v416 = vld [vmem:[#allocation2 + $0x48] sm:$0xff]
    %v417 = vld [vmem:[#allocation2 + $0x50] sm:$0xff]
    %v418 = vld [vmem:[#allocation2 + $0x58] sm:$0xff]
    %v419 = vld [vmem:[#allocation2 + $0x60] sm:$0xff]
    %v420 = vld [vmem:[#allocation2 + $0x68] sm:$0xff]
    %v421 = vld [vmem:[#allocation2 + $0x70] sm:$0xff]
    %v422 = vld [vmem:[#allocation2 + $0x78] sm:$0xff]
    %v423 = vld [vmem:[%s2] sm:$0x1]
    %v425 = vlaneseq
    %v426 = vshrl.u32 %v425, 7
    %v427 = vsub.s32 0, %v426
    %v428 = vrot.slane %v423, %v427
    %v430 = vadd.f32 %v407, %v428
    %v431 = vadd.f32 %v408, %v428
    %v432 = vadd.f32 %v409, %v428
    %v433 = vadd.f32 %v410, %v428
    %v434 = vadd.f32 %v411, %v428
    %v435 = vadd.f32 %v412, %v428
    %v436 = vadd.f32 %v413, %v428
    %v437 = vadd.f32 %v414, %v428
    %v438 = vadd.f32 %v415, %v428
    %v439 = vadd.f32 %v416, %v428
    %v440 = vadd.f32 %v417, %v428
    %v441 = vadd.f32 %v418, %v428
    %v442 = vadd.f32 %v419, %v428
    %v443 = vadd.f32 %v420, %v428
    %v444 = vadd.f32 %v421, %v428
    %v445 = vadd.f32 %v422, %v428
    %v446 = vmax.f32 %v430, 0.0
    %v447 = vmax.f32 %v431, 0.0
    %v448 = vmax.f32 %v432, 0.0
    %v449 = vmax.f32 %v433, 0.0
    %v450 = vmax.f32 %v434, 0.0
    %v451 = vmax.f32 %v435, 0.0
    %v452 = vmax.f32 %v436, 0.0
    %v453 = vmax.f32 %v437, 0.0
    %v454 = vmax.f32 %v438, 0.0
    %v455 = vmax.f32 %v439, 0.0
    %v456 = vmax.f32 %v440, 0.0
    %v457 = vmax.f32 %v441, 0.0
    %v458 = vmax.f32 %v442, 0.0
    %v459 = vmax.f32 %v443, 0.0
    %v460 = vmax.f32 %v444, 0.0
    %v461 = vmax.f32 %v445, 0.0
    %v462 = vpack.c.bf16 %v447, %v446
    %v463 = vpack.c.bf16 %v449, %v448
    %v464 = vpack.c.bf16 %v451, %v450
    %v465 = vpack.c.bf16 %v453, %v452
    %v466 = vpack.c.bf16 %v455, %v454
    %v467 = vpack.c.bf16 %v457, %v456
    %v468 = vpack.c.bf16 %v459, %v458
    %v469 = vpack.c.bf16 %v461, %v460
    %v478 = vunpack.c.l.b16 %v462
    %v479 = vunpack.c.h.b16 %v462
    %v480 = vunpack.c.l.b16 %v463
    %v481 = vunpack.c.h.b16 %v463
    %v482 = vunpack.c.l.b16 %v464
    %v483 = vunpack.c.h.b16 %v464
    %v484 = vunpack.c.l.b16 %v465
    %v485 = vunpack.c.h.b16 %v465
    %v486 = vunpack.c.l.b16 %v466
    %v487 = vunpack.c.h.b16 %v466
    %v488 = vunpack.c.l.b16 %v467
    %v489 = vunpack.c.h.b16 %v467
    %v490 = vunpack.c.l.b16 %v468
    %v491 = vunpack.c.h.b16 %v468
    %v492 = vunpack.c.l.b16 %v469
    %v493 = vunpack.c.h.b16 %v469
    %v494 = vpack.c.b16 %v478, %v478
    %v495 = vpack.c.b16 %v479, %v479
    %v496 = vpack.c.b16 %v480, %v480
    %v497 = vpack.c.b16 %v481, %v481
    %v498 = vpack.c.b16 %v482, %v482
    %v499 = vpack.c.b16 %v483, %v483
    %v500 = vpack.c.b16 %v484, %v484
    %v501 = vpack.c.b16 %v485, %v485
    %v502 = vpack.c.b16 %v486, %v486
    %v503 = vpack.c.b16 %v487, %v487
    %v504 = vpack.c.b16 %v488, %v488
    %v505 = vpack.c.b16 %v489, %v489
    %v506 = vpack.c.b16 %v490, %v490
    %v507 = vpack.c.b16 %v491, %v491
    %v508 = vpack.c.b16 %v492, %v492
    %v509 = vpack.c.b16 %v493, %v493
    %526 = vst [vmem:[%s3] sm:$0xf] %v494
    %527 = vst [vmem:[%s3 + $0x4] sm:$0xf] %v495
    %528 = vst [vmem:[%s3 + $0x8] sm:$0xf] %v496
    %529 = vst [vmem:[%s3 + $0xc] sm:$0xf] %v497
    %530 = vst [vmem:[%s3 + $0x10] sm:$0xf] %v498
    %531 = vst [vmem:[%s3 + $0x14] sm:$0xf] %v499
    %532 = vst [vmem:[%s3 + $0x18] sm:$0xf] %v500
    %533 = vst [vmem:[%s3 + $0x1c] sm:$0xf] %v501
    %534 = vst [vmem:[%s3 + $0x20] sm:$0xf] %v502
    %535 = vst [vmem:[%s3 + $0x24] sm:$0xf] %v503
    %536 = vst [vmem:[%s3 + $0x28] sm:$0xf] %v504
    %537 = vst [vmem:[%s3 + $0x2c] sm:$0xf] %v505
    %538 = vst [vmem:[%s3 + $0x30] sm:$0xf] %v506
    %539 = vst [vmem:[%s3 + $0x34] sm:$0xf] %v507
    %540 = vst [vmem:[%s3 + $0x38] sm:$0xf] %v508
    %541 = vst [vmem:[%s3 + $0x3c] sm:$0xf] %v509
  $region21: #{cpn_cr_loss.2} parent=0 // pred_fallthru
    _
  // Predicated region
  $region22: #{cpn_cr_loss.2} parent=0 // pred_check
    _
  $region23: #{cpn_cr_loss.2} parent=0 // pred_check_branch
    %543 = sbr.rel (0) target = $region25
  $region24: #{cpn_cr_loss.2} parent=0 // pred_region
    _
  $region25: #{cpn_cr_loss.2} parent=0 // pred_fallthru
    _
  // Predicated region
  $region26: #{cpn_cr_loss.2} parent=0 // pred_check
    _
  $region27: #{cpn_cr_loss.2} parent=0 // pred_check_branch
    %545 = sbr.rel (0) target = $region29
  $region28: #{cpn_cr_loss.2} parent=0 // pred_region
    _
  $region29: #{cpn_cr_loss.2} parent=0 // pred_fallthru
    _

</llo_original>
